<compile_context>
chip_gen: v6e
topology: v6e:2x2x1
jax: 0.10.0
libtpu: 0.0.40
codegen_flags: <defaults>
</compile_context>

<pallas_src>
import math

import jax
import jax.numpy as jnp
from jax.experimental import pallas as pl
from jax.experimental.pallas import tpu as pltpu


def _inverse_norm_kernel(x_ref, mean_ref, range_ref, o_ref):
    # o = x * range + mean   (inverse of (x - mean) / range); f32 accumulate.
    x = x_ref[...].astype(jnp.float32)
    r = range_ref[...]          # (1, Fp) f32, broadcasts over batch sublanes
    m = mean_ref[...]           # (1, Fp) f32
    o_ref[...] = (x * r + m).astype(o_ref.dtype)


# sublane packing requirement per element size (f32 / bf16 / int8-fp8)
_SUBLANE = {4: 8, 2: 16, 1: 32}

# Per-buffer VMEM budget.  ~4 buffers live at once (2x double-buffered input
# tile + 2x output tile); vmem_limit_bytes is set explicitly from actual usage.
_TILE_BUDGET_BYTES = 4 << 20

# Cap on the lcm-packed lane width (keeps the stats tile and row stride sane).
_MAX_PACKED_LANES = 2048

# Below this the pallas_call launch overhead dominates; plain-JAX FMA wins.
_MIN_PALLAS_BYTES = 16 << 10


def inverse_normalization(x, mean, rng, *, force_pallas=False):
    """Pallas-backed equivalent of Inverse(Normalization(...)).forward(x).

    x    : (..., F) array
    mean : (F,)  per-feature mean
    rng  : (F,)  per-feature range (std-like scale)
    """
    # TODO(synk): integer input dtypes would not match PyTorch semantics
    # (f32 round-trip + truncating cast); only float dtypes are supported.
    orig_shape = x.shape
    F = orig_shape[-1]
    x2 = x.reshape(-1, F)                      # free: flatten leading dims
    B = x2.shape[0]
    itemsize = jnp.dtype(x.dtype).itemsize
    mean_f32 = mean.astype(jnp.float32).reshape(-1)
    rng_f32 = rng.astype(jnp.float32).reshape(-1)

    # Tiny-input fast path: let XLA fuse the FMA instead of launching a kernel.
    if not force_pallas and B * F * itemsize < _MIN_PALLAS_BYTES:
        out = (x2.astype(jnp.float32) * rng_f32[None, :]
               + mean_f32[None, :]).astype(x.dtype)
        return out.reshape(orig_shape)

    # --- lane-dense packing: fold k feature columns per 128-lane group -------
    # Only taken when the row-major reshape is free (B % k == 0); otherwise the
    # kernel operates directly on the (B, F) layout with a full-F block.
    k = 1
    if F % 128 != 0:
        lcm = math.lcm(F, 128)
        kk = lcm // F
        if lcm <= _MAX_PACKED_LANES and B % kk == 0:
            k = kk
    Fp = k * F
    rows = B // k

    x_p = x2.reshape(rows, Fp) if k > 1 else x2          # free reshape
    mean_p = jnp.tile(mean_f32, k).reshape(1, Fp)
    rng_p = jnp.tile(rng_f32, k).reshape(1, Fp)

    # --- row-tile sizing ------------------------------------------------------
    sublane = _SUBLANE.get(itemsize, 8)
    row_bytes = max(1, Fp * itemsize)
    tb = (_TILE_BUDGET_BYTES // row_bytes) // sublane * sublane
    tb = max(sublane, tb)
    # never exceed the (sublane-rounded) total rows
    tb = min(tb, pl.cdiv(rows, sublane) * sublane)
    # keep >= 2 grid steps when there is enough work (v7x megacore sharding)
    if rows > sublane:
        half = pl.cdiv(pl.cdiv(rows, 2), sublane) * sublane
        tb = min(tb, max(sublane, half))

    grid = (pl.cdiv(rows, tb),)                 # ragged last block masked by Pallas

    cost = pl.CostEstimate(
        flops=2 * rows * Fp,
        transcendentals=0,
        bytes_accessed=2 * rows * Fp * itemsize + 2 * Fp * 4,
    )

    # ~4 live tiles + double-buffered (sublane-padded) stats + headroom.
    vmem_need = 4 * tb * Fp * itemsize + 4 * 8 * Fp * 4 + (1 << 20)
    vmem_limit = int(min(max(vmem_need, 16 << 20), 48 << 20))

    out = pl.pallas_call(
        _inverse_norm_kernel,
        out_shape=jax.ShapeDtypeStruct((rows, Fp), x.dtype),
        grid=grid,
        in_specs=[
            pl.BlockSpec((tb, Fp), lambda i: (i, 0)),
            pl.BlockSpec((1, Fp), lambda i: (0, 0)),
            pl.BlockSpec((1, Fp), lambda i: (0, 0)),
        ],
        out_specs=pl.BlockSpec((tb, Fp), lambda i: (i, 0)),
        compiler_params=pltpu.CompilerParams(
            dimension_semantics=("parallel",),   # v7x megacore; no-op on v5e/v6e
            vmem_limit_bytes=vmem_limit),
        cost_estimate=cost,
    )(x_p, mean_p, rng_p)

    return out.reshape(orig_shape)               # free reshape (rows*Fp == B*F)


class InversePallas:
    """Mirror of mlcolvar's `Inverse` wrapper: forward() calls module.inverse()."""

    def __init__(self, module):
        if not hasattr(module, "inverse"):
            raise AttributeError("The given module does not have a 'inverse' method!")
        self.module = module

    def inverse(self, *args, **kwargs):
        return self.module(*args, **kwargs)

    def forward(self, *args, **kwargs):
        return self.module.inverse(*args, **kwargs)

    __call__ = forward


class NormalizationPallas:
    """Minimal Normalization: forward = (x-mean)/range, inverse = x*range+mean.

    The inverse path (the one exercised by `Inverse`) runs in the Pallas kernel.
    """

    def __init__(self, in_features, mean, rng, force_pallas=False):
        self.in_features = in_features
        self.mean = mean            # (F,)
        self.range = rng            # (F,)
        self.force_pallas = force_pallas

    def __call__(self, x):
        # plain-JAX forward (not the hot path for Inverse)
        return (x - self.mean[None, :]) / self.range[None, :]

    def inverse(self, x):
        return inverse_normalization(x, self.mean, self.range,
                                     force_pallas=self.force_pallas)


if __name__ == "__main__":
    key = jax.random.PRNGKey(0)
    kx, km, kr = jax.random.split(key, 3)

    B, F = 256, 32
    x = jax.random.normal(kx, (B, F), dtype=jnp.float32)
    mean = jax.random.normal(km, (F,), dtype=jnp.float32)
    rng = jax.random.uniform(kr, (F,), dtype=jnp.float32, minval=0.5, maxval=2.0)

    norm = NormalizationPallas(F, mean, rng, force_pallas=True)
    inv = InversePallas(norm)

    # lane-packed path (F=32 -> k=4, Fp=128), 2 grid steps
    y = jax.block_until_ready(inv(x))            # = norm.inverse(x) = x*rng + mean
    ref = x * rng[None, :] + mean[None, :]
    assert y.shape == (B, F) and y.dtype == x.dtype
    assert jnp.allclose(y, ref, atol=1e-5, rtol=1e-5)
    # round-trip sanity: forward(inverse(x)) == x
    assert jnp.allclose(norm(y), x, atol=1e-4, rtol=1e-4)

    # unpacked fallback (B % k != 0) + ragged last block, full-F BlockSpec
    B2, F2 = 250, 96
    x2 = jax.random.normal(kx, (B2, F2), dtype=jnp.float32)
    m2 = jax.random.normal(km, (F2,), dtype=jnp.float32)
    r2 = jax.random.uniform(kr, (F2,), dtype=jnp.float32, minval=0.5, maxval=2.0)
    y2 = jax.block_until_ready(inverse_normalization(x2, m2, r2, force_pallas=True))
    assert jnp.allclose(y2, x2 * r2[None, :] + m2[None, :], atol=1e-5, rtol=1e-5)

    # packed path with ragged last block (rows not a multiple of tb)
    B3 = 200
    x3 = jax.random.normal(kx, (B3, F), dtype=jnp.float32)
    y3 = jax.block_until_ready(inverse_normalization(x3, mean, rng, force_pallas=True))
    assert jnp.allclose(y3, x3 * rng[None, :] + mean[None, :], atol=1e-5, rtol=1e-5)

    # tiny input exercises the plain-JAX fast path (launch overhead > work)
    ys = jax.block_until_ready(inverse_normalization(x[:8], mean, rng))
    assert jnp.allclose(ys, ref[:8], atol=1e-5, rtol=1e-5)

    print("KERNEL_OK")
</pallas_src>

<mosaic_0001>
module attributes {stable_mosaic.version = 11 : i64} {
  func.func @_inverse_norm_kernel(%arg0: i32, %arg1: memref<32x128xf32, #tpu.memory_space<vmem>>, %arg2: memref<1x128xf32, #tpu.memory_space<vmem>>, %arg3: memref<1x128xf32, #tpu.memory_space<vmem>>, %arg4: memref<32x128xf32, #tpu.memory_space<vmem>>) attributes {dimension_semantics = [#tpu.dimension_semantics<parallel>], iteration_bounds = array<i64: 2>, scalar_prefetch = 0 : i64, scratch_operands = 0 : i64, tpu.core_type = #tpu.core_type<tc>, window_params = [{transform_indices = @transform_0, window_bounds = array<i64: 32, 128>}, {pipeline_mode = #tpu.pipeline_mode<synchronous>, transform_indices = @transform_1, window_bounds = array<i64: 1, 128>}, {pipeline_mode = #tpu.pipeline_mode<synchronous>, transform_indices = @transform_2, window_bounds = array<i64: 1, 128>}, {transform_indices = @transform_3, window_bounds = array<i64: 32, 128>}]} {
    %c0 = arith.constant 0 : index
    %c0_0 = arith.constant 0 : index
    %0 = vector.load %arg1[%c0, %c0_0] : memref<32x128xf32, #tpu.memory_space<vmem>>, vector<32x128xf32>
    %c0_1 = arith.constant 0 : index
    %c0_2 = arith.constant 0 : index
    %1 = vector.load %arg3[%c0_1, %c0_2] : memref<1x128xf32, #tpu.memory_space<vmem>>, vector<1x128xf32>
    %c0_3 = arith.constant 0 : index
    %c0_4 = arith.constant 0 : index
    %2 = vector.load %arg2[%c0_3, %c0_4] : memref<1x128xf32, #tpu.memory_space<vmem>>, vector<1x128xf32>
    %3 = vector.broadcast %1 : vector<1x128xf32> to vector<32x128xf32>
    %4 = arith.mulf %0, %3 : vector<32x128xf32>
    %5 = vector.broadcast %2 : vector<1x128xf32> to vector<32x128xf32>
    %6 = arith.addf %4, %5 : vector<32x128xf32>
    %c0_5 = arith.constant 0 : index
    %c0_6 = arith.constant 0 : index
    %7 = vector.load %arg4[%c0_5, %c0_6] : memref<32x128xf32, #tpu.memory_space<vmem>>, vector<32x128xf32>
    tpu.vector_store %arg4[%c0_5, %c0_6], %6 {strides = array<i32>} : memref<32x128xf32, #tpu.memory_space<vmem>>, vector<32x128xf32>,
    return
  }
  func.func @transform_0(%arg0: i32) -> (i32, i32) {
    %c0_i32 = arith.constant 0 : i32
    %c0_i32_0 = arith.constant 0 : i32
    return %arg0, %c0_i32 : i32, i32
  }
  func.func @transform_1(%arg0: i32) -> (i32, i32) {
    %c0_i32 = arith.constant 0 : i32
    %c0_i32_0 = arith.constant 0 : i32
    %c0_i32_1 = arith.constant 0 : i32
    return %c0_i32, %c0_i32_0 : i32, i32
  }
  func.func @transform_2(%arg0: i32) -> (i32, i32) {
    %c0_i32 = arith.constant 0 : i32
    %c0_i32_0 = arith.constant 0 : i32
    %c0_i32_1 = arith.constant 0 : i32
    return %c0_i32, %c0_i32_0 : i32, i32
  }
  func.func @transform_3(%arg0: i32) -> (i32, i32) {
    %c0_i32 = arith.constant 0 : i32
    %c0_i32_0 = arith.constant 0 : i32
    return %arg0, %c0_i32 : i32, i32
  }
}

</mosaic_0001>

<llo_original>
// kernel: tpu_custom_call.1
$region0: #{tpu_custom_call.1}
  #allocation0 [shape = 'u32[]', space=smem, size = 0x4, offset = 0x4, fixed_abs, tag = 'smem constant byte address 0x4 - core index']
  #allocation1 [shape = 'u32[144,128]{1,0:T(1,128)}', space=vmem, size = 0x12000, scoped, tag = 'internal scratch']
  %s0 = inlined_call_operand.hbm [shape: f32[64,128], index: 0, kind: input, shape index: {}]
  %s1 = inlined_call_operand.vmem [shape: f32[1,128], index: 1, kind: input, shape index: {}]
  %s2 = inlined_call_operand.vmem [shape: f32[1,128], index: 2, kind: input, shape index: {}]
  %s3 = inlined_call_operand.hbm [shape: f32[64,128], index: 3, kind: output, shape index: {}]
  %s4 = sld [smem:[#allocation0]]
  $region49: #{tpu_custom_call.1} parent=0
    _
  %s6 = ssub.s32 1, %s4
  %s7 = scalar_select 0, %s6, %s4
  $region1: #{tpu_custom_call.1} parent=0
    #allocation2 [shape = 'u8[32768]{0}', space=vmem, size = 0x8000, scoped, tag = 'input window, operand 0']
    #allocation3 [shape = 's32[2]{0}', space=sflag, size = 0x8, scoped, tag = 'scoped memory for tpu_custom_call.1']
    #allocation4 [shape = 's32[2]{0}', space=sflag, size = 0x8, scoped, tag = 'scoped memory for tpu_custom_call.1']
    #allocation5 [shape = 'u8[32768]{0}', space=vmem, size = 0x8000, scoped, tag = 'output window, operand 0']
    %8 = vsyncpa [#allocation3], 0
    %s9 = scalar_lea.sflag [#allocation3], 1
    %10 = vsyncpa %s9, 0
    %11 = vsyncpa [#allocation4], 0
    %s12 = scalar_lea.sflag [#allocation4], 1
    %13 = vsyncpa %s12, 0
    loop: start=0, step=1, limit=4
    $region2: #{tpu_custom_call.1} parent=1 // loop_pre_header
      _
    $region3: #{tpu_custom_call.1} parent=1 // loop_header
      %s15 = sphi 0, %s19
      %p16 = scmp.ge.s32.totalorder %s15, 4
      %s25 = sphi 0, %s27
      %s28 = sphi 0, %s25
      %s29 = sphi 0, %s28
      %s45 = sphi 0, %s29
      %s49 = sphi 0, %s49
      %s51 = sphi 0, %s49
      %s52 = sphi 0, %s51
      %s66 = sphi 0, %s52
      %s70 = sphi 0, %s70
      %s72 = sphi 0, %s70
      %s73 = sphi 0, %s72
      %s87 = sphi 0, %s73
      %s93 = sphi 0, %s95
      %s96 = sphi 0, %s93
      %s97 = sphi 0, %s96
      %s113 = sphi 0, %s97
    $region4: #{tpu_custom_call.1} parent=1 // loop_header_branch
      %18 = sbr.rel (%p16) target = $region8
    $region5: #{tpu_custom_call.1} parent=1 // loop_body
      %s20 = ssub.s32 %s15, 1
      %s21 = ssub.s32 %s15, 2
      %s22 = sadd.s32 %s15, 1
      %s23 = ssub.s32 %s15, %s22
      %p24 = scmp.eq.s32.totalorder %s23, 0
      %s26 = sadd.s32 %s25, 1
      %s27 = scalar_select %p24, %s25, %s26
      %p30 = pneg %p24
      %p31 = scmp.eq.s32.totalorder %s15, 1
      %p32 = por %p30, %p31
      %p33 = scmp.ne.s32.totalorder %s25, %s28
      %p34 = scmp.eq.s32.totalorder %s15, 0
      %p35 = por %p33, %p34
      %p36 = scmp.ne.s32.totalorder %s25, %s28
      %p37 = scmp.eq.s32.totalorder %s20, 1
      %p38 = por %p36, %p37
      %p39 = scmp.ne.s32.totalorder %s28, %s29
      %p40 = scmp.eq.s32.totalorder %s20, 0
      %p41 = por %p39, %p40
      %p42 = scmp.ne.s32.totalorder %s28, %s29
      %p43 = scmp.eq.s32.totalorder %s21, 1
      %p44 = por %p42, %p43
      %p46 = scmp.ne.s32.totalorder %s29, %s45
      %p47 = scmp.eq.s32.totalorder %s21, 0
      %p48 = por %p46, %p47
      %s50 = sadd.s32 %s49, 1
      %p53 = scmp.eq.s32.totalorder %s15, 1
      %p54 = scmp.ne.s32.totalorder %s49, %s51
      %p55 = scmp.eq.s32.totalorder %s15, 0
      %p56 = por %p54, %p55
      %p57 = scmp.ne.s32.totalorder %s49, %s51
      %p58 = scmp.eq.s32.totalorder %s20, 1
      %p59 = por %p57, %p58
      %p60 = scmp.ne.s32.totalorder %s51, %s52
      %p61 = scmp.eq.s32.totalorder %s20, 0
      %p62 = por %p60, %p61
      %p63 = scmp.ne.s32.totalorder %s51, %s52
      %p64 = scmp.eq.s32.totalorder %s21, 1
      %p65 = por %p63, %p64
      %p67 = scmp.ne.s32.totalorder %s52, %s66
      %p68 = scmp.eq.s32.totalorder %s21, 0
      %p69 = por %p67, %p68
      %s71 = sadd.s32 %s70, 1
      %p74 = scmp.eq.s32.totalorder %s15, 1
      %p75 = scmp.ne.s32.totalorder %s70, %s72
      %p76 = scmp.eq.s32.totalorder %s15, 0
      %p77 = por %p75, %p76
      %p78 = scmp.ne.s32.totalorder %s70, %s72
      %p79 = scmp.eq.s32.totalorder %s20, 1
      %p80 = por %p78, %p79
      %p81 = scmp.ne.s32.totalorder %s72, %s73
      %p82 = scmp.eq.s32.totalorder %s20, 0
      %p83 = por %p81, %p82
      %p84 = scmp.ne.s32.totalorder %s72, %s73
      %p85 = scmp.eq.s32.totalorder %s21, 1
      %p86 = por %p84, %p85
      %p88 = scmp.ne.s32.totalorder %s73, %s87
      %p89 = scmp.eq.s32.totalorder %s21, 0
      %p90 = por %p88, %p89
      %s91 = ssub.s32 %s15, %s22
      %p92 = scmp.eq.s32.totalorder %s91, 0
      %s94 = sadd.s32 %s93, 1
      %s95 = scalar_select %p92, %s93, %s94
      %p98 = pneg %p92
      %p99 = scmp.eq.s32.totalorder %s15, 1
      %p100 = por %p98, %p99
      %p101 = scmp.ne.s32.totalorder %s93, %s96
      %p102 = scmp.eq.s32.totalorder %s15, 0
      %p103 = por %p101, %p102
      %p104 = scmp.ne.s32.totalorder %s93, %s96
      %p105 = scmp.eq.s32.totalorder %s20, 1
      %p106 = por %p104, %p105
      %p107 = scmp.ne.s32.totalorder %s96, %s97
      %p108 = scmp.eq.s32.totalorder %s20, 0
      %p109 = por %p107, %p108
      %p110 = scmp.ne.s32.totalorder %s96, %s97
      %p111 = scmp.eq.s32.totalorder %s21, 1
      %p112 = por %p110, %p111
      %p114 = scmp.ne.s32.totalorder %s97, %s113
      %p115 = scmp.eq.s32.totalorder %s21, 0
      %p116 = por %p114, %p115
      %p117 = scmp.le.s32.totalorder 1, %s15
      %p118 = scmp.lt.s32.totalorder %s15, 3
      %p119 = pnand %p117, %p118
      %p120 = pneg %p119
      // Predicated region
      $region9: #{tpu_custom_call.1} parent=5 // pred_check
        _
      $region10: #{tpu_custom_call.1} parent=5 // pred_check_branch
        %122 = sbr.rel (%p119) target = $region12
      $region11: #{tpu_custom_call.1} parent=5 // pred_region
        %s123 = ssub.s32 %s15, 1
        // Predicated region
        $region13: #{tpu_custom_call.1} parent=11 // pred_check
          %p124 = pneg %p62
        $region14: #{tpu_custom_call.1} parent=11 // pred_check_branch
          %126 = sbr.rel (%p124) target = $region16
        $region15: #{tpu_custom_call.1} parent=11 // pred_region
          _
        $region16: #{tpu_custom_call.1} parent=11 // pred_fallthru
          _
        // Predicated region
        $region17: #{tpu_custom_call.1} parent=11 // pred_check
          %p127 = pneg %p83
        $region18: #{tpu_custom_call.1} parent=11 // pred_check_branch
          %129 = sbr.rel (%p127) target = $region20
        $region19: #{tpu_custom_call.1} parent=11 // pred_region
          _
        $region20: #{tpu_custom_call.1} parent=11 // pred_fallthru
          _
      $region12: #{tpu_custom_call.1} parent=5 // pred_fallthru
        _
      %p130 = scmp.lt.s32.totalorder %s15, 2
      // Predicated region
      $region21: #{tpu_custom_call.1} parent=5 // pred_check
        %p131 = pneg %p130
      $region22: #{tpu_custom_call.1} parent=5 // pred_check_branch
        %133 = sbr.rel (%p131) target = $region24
      $region23: #{tpu_custom_call.1} parent=5 // pred_region
        // Predicated region
        $region25: #{tpu_custom_call.1} parent=23 // pred_check
          %p134 = pneg %p35
        $region26: #{tpu_custom_call.1} parent=23 // pred_check_branch
          %136 = sbr.rel (%p134) target = $region28
        $region27: #{tpu_custom_call.1} parent=23 // pred_region
          %s137 = sand.u32 %s25, 1
          %s138 = scalar_lea.sflag [#allocation3], %s137
          %s139 = sand.u32 %s25, 1
          %s140 = smul.addr %s139, 32
          %s141 = scalar_lea.vmem [#allocation2], %s140
          %s142 = smul.u32 4, %s15
          %s144 = ssub.s32 512, 512
          %145 = vsyncadd %s138, %s144
          %s146 = smul.addr %s142, 128
          %s147 = scalar_lea.hbm %s0, %s146
          %s148 = sshll.u32 %s141, 4
          %s149 = int_to_ptr.vmem [resolvable:$true] %s148
          %154 = dma.hbm_to_vmem [thread:$0]  %s147, 512, %s149, %s138, 128, 128, 8
        $region28: #{tpu_custom_call.1} parent=23 // pred_fallthru
          _
      $region24: #{tpu_custom_call.1} parent=5 // pred_fallthru
        _
      %p155 = scmp.le.s32.totalorder 1, %s15
      %p156 = scmp.lt.s32.totalorder %s15, 3
      %p157 = pnand %p155, %p156
      %p158 = pneg %p157
      // Predicated region
      $region29: #{tpu_custom_call.1} parent=5 // pred_check
        _
      $region30: #{tpu_custom_call.1} parent=5 // pred_check_branch
        %160 = sbr.rel (%p157) target = $region32
      $region31: #{tpu_custom_call.1} parent=5 // pred_region
        %s161 = ssub.s32 %s15, 1
        %s162 = sand.u32 %s28, 1
        %s163 = scalar_lea.sflag [#allocation3], %s162
        %s164 = sand.u32 %s28, 1
        %s165 = smul.addr %s164, 32
        %s166 = scalar_lea.vmem [#allocation2], %s165
        // Predicated region
        $region33: #{tpu_custom_call.1} parent=31 // pred_check
          %p167 = pneg %p41
        $region34: #{tpu_custom_call.1} parent=31 // pred_check_branch
          %169 = sbr.rel (%p167) target = $region36
        $region35: #{tpu_custom_call.1} parent=31 // pred_region
          %170 = dma.done %s163, 512
        $region36: #{tpu_custom_call.1} parent=31 // pred_fallthru
          _
        %s171 = sand.u32 %s28, 1
        %s172 = scalar_lea.sflag [#allocation3], %s171
        %s173 = sand.u32 %s28, 1
        %s174 = smul.addr %s173, 32
        %s175 = scalar_lea.vmem [#allocation2], %s174
        %p176 = pneg %p41
        %p177 = pneg %p38
        %p178 = pneg %p62
        %p179 = pneg %p59
        %p180 = pneg %p83
        %p181 = pneg %p80
        %p182 = pneg %p109
        %p183 = pneg %p106
        %s184 = sand.u32 %s96, 1
        %s185 = scalar_lea.sflag [#allocation4], %s184
        %s186 = sand.u32 %s96, 1
        %s187 = smul.addr %s186, 32
        %s188 = scalar_lea.vmem [#allocation5], %s187
        %s189 = smul.u32 4, %s20
        %s190 = smul.u32 4, %s20
        %v191 = vld [vmem:[%s166] sm:$0xff]
        %v192 = vld [vmem:[%s166 + $0x8] sm:$0xff]
        %v193 = vld [vmem:[%s166 + $0x10] sm:$0xff]
        %v194 = vld [vmem:[%s166 + $0x18] sm:$0xff]
        %v195 = vld [vmem:[%s2] sm:$0x1]
        %v196 = vld [vmem:[%s1] sm:$0x1]
        %v198 = vlaneseq
        %v199 = vshrl.u32 %v198, 7
        %v200 = vsub.s32 0, %v199
        %v201 = vrot.slane %v195, %v200
        %v203 = vmul.f32 %v191, %v201
        %v204 = vmul.f32 %v192, %v201
        %v205 = vmul.f32 %v193, %v201
        %v206 = vmul.f32 %v194, %v201
        %v208 = vlaneseq
        %v209 = vshrl.u32 %v208, 7
        %v210 = vsub.s32 0, %v209
        %v211 = vrot.slane %v196, %v210
        %v213 = vadd.f32 %v203, %v211
        %v214 = vadd.f32 %v204, %v211
        %v215 = vadd.f32 %v205, %v211
        %v216 = vadd.f32 %v206, %v211
        %217 = vst [vmem:[%s188] sm:$0xff] %v213
        %218 = vst [vmem:[%s188 + $0x8] sm:$0xff] %v214
        %219 = vst [vmem:[%s188 + $0x10] sm:$0xff] %v215
        %220 = vst [vmem:[%s188 + $0x18] sm:$0xff] %v216
        %s221 = sand.u32 %s96, 1
        %s222 = scalar_lea.sflag [#allocation4], %s221
        %s223 = sand.u32 %s96, 1
        %s224 = smul.addr %s223, 32
        %s225 = scalar_lea.vmem [#allocation5], %s224
        // Predicated region
        $region37: #{tpu_custom_call.1} parent=31 // pred_check
          %p226 = pneg %p106
        $region38: #{tpu_custom_call.1} parent=31 // pred_check_branch
          %228 = sbr.rel (%p226) target = $region40
        $region39: #{tpu_custom_call.1} parent=31 // pred_region
          %s229 = smul.u32 4, %s20
          %s231 = ssub.s32 512, 512
          %232 = vsyncadd %s222, %s231
          %s233 = smul.addr %s229, 128
          %s234 = scalar_lea.hbm %s3, %s233
          %s235 = sshll.u32 %s225, 4
          %s236 = int_to_ptr.vmem [resolvable:$true] %s235
          %241 = dma.vmem_to_hbm [thread:$0]  %s236, 512, %s234, %s222, 128, 128, 8
        $region40: #{tpu_custom_call.1} parent=31 // pred_fallthru
          _
      $region32: #{tpu_custom_call.1} parent=5 // pred_fallthru
        _
      %p242 = scmp.le.s32.totalorder 2, %s15
      // Predicated region
      $region41: #{tpu_custom_call.1} parent=5 // pred_check
        %p243 = pneg %p242
      $region42: #{tpu_custom_call.1} parent=5 // pred_check_branch
        %245 = sbr.rel (%p243) target = $region44
      $region43: #{tpu_custom_call.1} parent=5 // pred_region
        %s246 = ssub.s32 %s15, 2
        // Predicated region
        $region45: #{tpu_custom_call.1} parent=43 // pred_check
          %p247 = pneg %p112
        $region46: #{tpu_custom_call.1} parent=43 // pred_check_branch
          %249 = sbr.rel (%p247) target = $region48
        $region47: #{tpu_custom_call.1} parent=43 // pred_region
          %s250 = sand.u32 %s97, 1
          %s251 = scalar_lea.sflag [#allocation4], %s250
          %s252 = sand.u32 %s97, 1
          %s253 = smul.addr %s252, 32
          %s254 = scalar_lea.vmem [#allocation5], %s253
          %255 = dma.done %s251, 512
        $region48: #{tpu_custom_call.1} parent=43 // pred_fallthru
          _
      $region44: #{tpu_custom_call.1} parent=5 // pred_fallthru
        _
    $region6: #{tpu_custom_call.1} parent=1 // loop_footer
      %s19 = sadd.s32 1, %s15
    $region7: #{tpu_custom_call.1} parent=1 // loop_footer_branch
      %14 = sbr.rel target = $region3
    $region8: #{tpu_custom_call.1} parent=1 // loop_exit
      _
    %256 = vsyncpa [#allocation3], 1
    %s257 = scalar_lea.sflag [#allocation3], 1
    %258 = vsyncpa %s257, 1
    %259 = vsyncpa [#allocation4], 1
    %s260 = scalar_lea.sflag [#allocation4], 1
    %261 = vsyncpa %s260, 1

</llo_original>
